<compile_context>
chip_gen: v5e
topology: v5e:2x2
jax: 0.10.0
libtpu: 0.0.40
codegen_flags: <defaults>
</compile_context>

<pallas_src>
import functools

import jax
import jax.numpy as jnp
from jax.experimental import pallas as pl
from jax.experimental.pallas import tpu as pltpu


def _round_up(v, m):
    return ((v + m - 1) // m) * m


def _predictor_kernel(x_ref, w_ref, b_ref, out_ref):
    # x_ref:  (TILE_N, C)      bf16 flattened features (one ROI tile)
    # w_ref:  (C, K_pad)       bf16 fused [cls | bbox] weight, lane-padded
    # b_ref:  (1, K_pad)       f32 fused bias
    # out_ref:(TILE_N, K_pad)  f32 fused output
    acc = jnp.dot(x_ref[...], w_ref[...], preferred_element_type=jnp.float32)
    out_ref[...] = acc + b_ref[...]


def prepare_params(cls_w, cls_b, bbox_w, bbox_b, compute_dtype=jnp.bfloat16):
    """One-time weight prep (do NOT call per forward).

    cls_w:  (num_classes, C)      PyTorch nn.Linear layout
    cls_b:  (num_classes,)
    bbox_w: (num_classes*4, C)
    bbox_b: (num_classes*4,)
    Returns (w_fused (C, K_pad) bf16, b_fused (1, K_pad) f32, k, k4).
    """
    k, c = cls_w.shape
    k4 = bbox_w.shape[0]
    k_total = k + k4
    k_pad = _round_up(k_total, 128)

    w_fused = jnp.concatenate([cls_w.T, bbox_w.T], axis=1)          # (C, K+4K)
    w_fused = jnp.pad(w_fused, ((0, 0), (0, k_pad - k_total)))
    w_fused = w_fused.astype(compute_dtype)

    b_fused = jnp.concatenate([cls_b, bbox_b]).reshape(1, k_total)
    b_fused = jnp.pad(b_fused, ((0, 0), (0, k_pad - k_total)))
    b_fused = b_fused.astype(jnp.float32)
    return w_fused, b_fused, k, k4


@functools.partial(jax.jit, static_argnames=("num_classes", "tile_n", "compute_dtype"))
def fast_rcnn_predictor(x, w_fused, b_fused, *, num_classes,
                        tile_n=256, compute_dtype=jnp.bfloat16):
    """Forward pass matching torchvision FastRCNNPredictor.forward.

    x: (N, C) or (N, C, 1, 1) float32
    w_fused / b_fused: output of prepare_params().
    Returns (scores (N, num_classes), bbox_deltas (N, num_classes*4)), f32.
    """
    if x.ndim == 4:
        assert tuple(x.shape[2:]) == (1, 1), (
            f"x has the wrong shape, expecting the last two dimensions to be "
            f"[1,1] instead of {list(x.shape[2:])}")
    x2d = x.reshape(x.shape[0], -1)                                  # flatten(start_dim=1)

    n, c = x2d.shape
    k = num_classes
    k4 = num_classes * 4
    k_pad = w_fused.shape[1]
    assert w_fused.shape[0] == c and b_fused.shape == (1, k_pad)

    # Tile over N: multiple of 8 sublanes, capped at the requested tile size.
    tn = min(tile_n, _round_up(n, 8))
    n_pad = _round_up(n, tn)
    if n_pad != n:
        x2d = jnp.pad(x2d, ((0, n_pad - n), (0, 0)))
    x2d = x2d.astype(compute_dtype)

    grid = (n_pad // tn,)
    out_fused = pl.pallas_call(
        _predictor_kernel,
        out_shape=jax.ShapeDtypeStruct((n_pad, k_pad), jnp.float32),
        grid_spec=pltpu.PrefetchScalarGridSpec(
            num_scalar_prefetch=0,
            grid=grid,
            in_specs=[
                pl.BlockSpec((tn, c), lambda i: (i, 0)),       # x tile (pipelined)
                pl.BlockSpec((c, k_pad), lambda i: (0, 0)),    # weights resident
                pl.BlockSpec((1, k_pad), lambda i: (0, 0)),    # bias resident
            ],
            out_specs=pl.BlockSpec((tn, k_pad), lambda i: (i, 0)),
        ),
        compiler_params=pltpu.CompilerParams(
            dimension_semantics=("parallel",)),
    )(x2d, w_fused, b_fused)

    scores = out_fused[:n, :k]
    bbox_deltas = out_fused[:n, k:k + k4]
    return scores, bbox_deltas


def _init_params(key, in_channels, num_classes):
    """Deterministic nn.Linear-style init (uniform(-1/sqrt(fan_in), +))."""
    k1, k2, k3, k4 = jax.random.split(key, 4)
    bound = 1.0 / jnp.sqrt(jnp.float32(in_channels))
    cls_w = jax.random.uniform(k1, (num_classes, in_channels),
                               jnp.float32, -bound, bound)
    cls_b = jax.random.uniform(k2, (num_classes,), jnp.float32, -bound, bound)
    bbox_w = jax.random.uniform(k3, (num_classes * 4, in_channels),
                                jnp.float32, -bound, bound)
    bbox_b = jax.random.uniform(k4, (num_classes * 4,),
                                jnp.float32, -bound, bound)
    return cls_w, cls_b, bbox_w, bbox_b


if __name__ == "__main__":
    key = jax.random.PRNGKey(0)
    k_x, k_p = jax.random.split(key)

    batch = 2
    in_channels = 32
    num_classes = 5

    # Input mimicking ROI-pooled features: (N, C, 1, 1) NCHW.
    x = jax.random.normal(k_x, (batch, in_channels, 1, 1), jnp.float32)
    cls_w, cls_b, bbox_w, bbox_b = _init_params(k_p, in_channels, num_classes)

    # One-time weight prep (transpose + fuse + pad + bf16 cast).
    w_fused, b_fused, _, _ = prepare_params(cls_w, cls_b, bbox_w, bbox_b)

    scores, bbox_deltas = fast_rcnn_predictor(
        x, w_fused, b_fused, num_classes=num_classes)
    jax.block_until_ready((scores, bbox_deltas))

    # Reference check in plain JAX (f32).  bf16 matmul -> loosened tolerance.
    x2d = x.reshape(batch, -1)
    ref_scores = x2d @ cls_w.T + cls_b
    ref_bbox = x2d @ bbox_w.T + bbox_b
    assert scores.shape == (batch, num_classes)
    assert bbox_deltas.shape == (batch, num_classes * 4)
    assert jnp.allclose(scores, ref_scores, atol=3e-2), (
        float(jnp.max(jnp.abs(scores - ref_scores))))
    assert jnp.allclose(bbox_deltas, ref_bbox, atol=3e-2), (
        float(jnp.max(jnp.abs(bbox_deltas - ref_bbox))))

    print("KERNEL_OK")
</pallas_src>

<mosaic_0001>
module attributes {stable_mosaic.version = 11 : i64} {
  func.func @_predictor_kernel(%arg0: i32, %arg1: memref<8x32xbf16, #tpu.memory_space<vmem>>, %arg2: memref<32x128xbf16, #tpu.memory_space<vmem>>, %arg3: memref<1x128xf32, #tpu.memory_space<vmem>>, %arg4: memref<8x128xf32, #tpu.memory_space<vmem>>) attributes {dimension_semantics = [#tpu.dimension_semantics<parallel>], iteration_bounds = array<i64: 1>, scalar_prefetch = 0 : i64, scratch_operands = 0 : i64, tpu.core_type = #tpu.core_type<tc>, window_params = [{transform_indices = @transform_0, window_bounds = array<i64: 8, 32>}, {pipeline_mode = #tpu.pipeline_mode<synchronous>, transform_indices = @transform_1, window_bounds = array<i64: 32, 128>}, {pipeline_mode = #tpu.pipeline_mode<synchronous>, transform_indices = @transform_2, window_bounds = array<i64: 1, 128>}, {transform_indices = @transform_3, window_bounds = array<i64: 8, 128>}]} {
    %c0 = arith.constant 0 : index
    %c0_0 = arith.constant 0 : index
    %0 = vector.load %arg1[%c0, %c0_0] : memref<8x32xbf16, #tpu.memory_space<vmem>>, vector<8x32xbf16>
    %c0_1 = arith.constant 0 : index
    %c0_2 = arith.constant 0 : index
    %1 = vector.load %arg2[%c0_1, %c0_2] : memref<32x128xbf16, #tpu.memory_space<vmem>>, vector<32x128xbf16>
    %cst = arith.constant dense<0.000000e+00> : vector<8x128xf32>
    %2 = tpu.matmul %0, %1, %cst {dimension_numbers = #tpu.dot_dimension_numbers<[1], [0], [0], [1], [0, 0, 1, 1], [], []>} : vector<8x32xbf16>, vector<32x128xbf16>, vector<8x128xf32> -> vector<8x128xf32>
    %c0_3 = arith.constant 0 : index
    %c0_4 = arith.constant 0 : index
    %3 = vector.load %arg3[%c0_3, %c0_4] : memref<1x128xf32, #tpu.memory_space<vmem>>, vector<1x128xf32>
    %4 = vector.broadcast %3 : vector<1x128xf32> to vector<8x128xf32>
    %5 = arith.addf %2, %4 : vector<8x128xf32>
    %c0_5 = arith.constant 0 : index
    %c0_6 = arith.constant 0 : index
    %6 = vector.load %arg4[%c0_5, %c0_6] : memref<8x128xf32, #tpu.memory_space<vmem>>, vector<8x128xf32>
    tpu.vector_store %arg4[%c0_5, %c0_6], %5 {strides = array<i32>} : memref<8x128xf32, #tpu.memory_space<vmem>>, vector<8x128xf32>,
    return
  }
  func.func @transform_0(%arg0: i32) -> (i32, i32) {
    %c0_i32 = arith.constant 0 : i32
    %c0_i32_0 = arith.constant 0 : i32
    return %arg0, %c0_i32 : i32, i32
  }
  func.func @transform_1(%arg0: i32) -> (i32, i32) {
    %c0_i32 = arith.constant 0 : i32
    %c0_i32_0 = arith.constant 0 : i32
    %c0_i32_1 = arith.constant 0 : i32
    return %c0_i32, %c0_i32_0 : i32, i32
  }
  func.func @transform_2(%arg0: i32) -> (i32, i32) {
    %c0_i32 = arith.constant 0 : i32
    %c0_i32_0 = arith.constant 0 : i32
    %c0_i32_1 = arith.constant 0 : i32
    return %c0_i32, %c0_i32_0 : i32, i32
  }
  func.func @transform_3(%arg0: i32) -> (i32, i32) {
    %c0_i32 = arith.constant 0 : i32
    %c0_i32_0 = arith.constant 0 : i32
    return %arg0, %c0_i32 : i32, i32
  }
}

</mosaic_0001>

<llo_original>
// kernel: fast_rcnn_predictor.1
$region0: #{fast_rcnn_predictor.1}
  #allocation0 [shape = 'u32[]', space=smem, size = 0x4, offset = 0x4, fixed_abs, tag = 'smem constant byte address 0x4 - core index']
  #allocation1 [shape = 'u32[72,128]{1,0:T(1,128)}', space=vmem, size = 0x9000, scoped, tag = 'internal scratch']
  %s0 = inlined_call_operand.vmem [shape: bf16[8,32], index: 0, kind: input, shape index: {}]
  %s1 = inlined_call_operand.hbm [shape: bf16[32,128], index: 1, kind: input, shape index: {}]
  %s2 = inlined_call_operand.vmem [shape: f32[1,128], index: 2, kind: input, shape index: {}]
  %s3 = inlined_call_operand.vmem [shape: f32[8,128], index: 3, kind: output, shape index: {}]
  %s4 = sld [smem:[#allocation0]]
  $region26: #{fast_rcnn_predictor.1} parent=0
    _
  %s6 = ssub.s32 1, %s4
  %s7 = scalar_select 0, %s6, %s4
  $region1: #{fast_rcnn_predictor.1} parent=0
    #allocation2 [shape = 'u8[8192]{0}', space=vmem, size = 0x2000, scoped, tag = 'input window, operand 1, single buffered']
    #allocation3 [shape = 's32[1]{0}', space=sflag, size = 0x4, scoped, tag = 'scoped memory for fast_rcnn_predictor.1']
    %8 = vsyncpa [#allocation3], 0
    // Predicated region
    $region2: #{fast_rcnn_predictor.1} parent=1 // pred_check
      _
    $region3: #{fast_rcnn_predictor.1} parent=1 // pred_check_branch
      %10 = sbr.rel (0) target = $region5
    $region4: #{fast_rcnn_predictor.1} parent=1 // pred_region
      _
    $region5: #{fast_rcnn_predictor.1} parent=1 // pred_fallthru
      _
    // Predicated region
    $region6: #{fast_rcnn_predictor.1} parent=1 // pred_check
      _
    $region7: #{fast_rcnn_predictor.1} parent=1 // pred_check_branch
      %12 = sbr.rel (0) target = $region9
    $region8: #{fast_rcnn_predictor.1} parent=1 // pred_region
      %14 = vsyncadd [#allocation3], 0
      %s15 = sshll.u32 %s1, 4
      %s16 = int_to_ptr.hbm [resolvable:$true] %s15
      %s17 = sshll.u32 [#allocation2], 4
      %s18 = int_to_ptr.vmem [resolvable:$true] %s17
      %23 = dma.hbm_to_vmem [thread:$0]  %s16, 256, %s18, [#allocation3], 64, 64, 4
    $region9: #{fast_rcnn_predictor.1} parent=1 // pred_fallthru
      _
    // Predicated region
    $region10: #{fast_rcnn_predictor.1} parent=1 // pred_check
      _
    $region11: #{fast_rcnn_predictor.1} parent=1 // pred_check_branch
      %25 = sbr.rel (0) target = $region13
    $region12: #{fast_rcnn_predictor.1} parent=1 // pred_region
      _
    $region13: #{fast_rcnn_predictor.1} parent=1 // pred_fallthru
      _
    // Predicated region
    $region14: #{fast_rcnn_predictor.1} parent=1 // pred_check
      _
    $region15: #{fast_rcnn_predictor.1} parent=1 // pred_check_branch
      %27 = sbr.rel (0) target = $region17
    $region16: #{fast_rcnn_predictor.1} parent=1 // pred_region
      %29 = dma.done [#allocation3], 256
    $region17: #{fast_rcnn_predictor.1} parent=1 // pred_fallthru
      _
    %v31 = vld [vmem:[%s0] sm:$0xf]
    %v32 = vld [vmem:[#allocation2] sm:$0xf]
    %v33 = vld [vmem:[#allocation2 + $0x4] sm:$0xf]
    %v34 = vld [vmem:[#allocation2 + $0x8] sm:$0xf]
    %v35 = vld [vmem:[#allocation2 + $0xc] sm:$0xf]
    %v36 = vld [vmem:[%s2] sm:$0x1]
    %v38 = vperm.slane %v36, 0
    %v44 = vunpack.c.l.b16 %v32
    %v45 = vunpack.c.l.b16 %v33
    %v46 = vunpack.c.l.b16 %v34
    %v47 = vunpack.c.l.b16 %v35
    %v48 = vpack.c.b16 %v45, %v44
    %v49 = vpack.c.b16 %v47, %v46
    %vm52 = vcmask 261120
    %v54 = vsel %vm52, %v31, 0
    %56 = vmatpush.bf16.msra.mxu0 0
    %57 = vmatpush.bf16.msra.mxu0 0
    %58 = vmatpush.bf16.msra.mxu0 0
    %59 = vmatpush.bf16.msra.mxu0 0
    %60 = vmatpush.bf16.msra.mxu0 0
    %61 = vmatpush.bf16.msra.mxu0 0
    %62 = vmatpush.bf16.msra.mxu0 %v49
    %63 = vmatpush.bf16.msra.mxu0 %v48
    %64 = vmatmul.bf16.gmra.mxu0 %v54
    %v65 = vpop.f32.mrf.mxu0
    %v66 = vadd.f32 %v38, %v65
    %v67 = vpop.f32.mrf.mxu0
    %68 = vdwg.mxu0
    %69 = vst [vmem:[%s3] sm:$0xff] %v66
    // Predicated region
    $region18: #{fast_rcnn_predictor.1} parent=1 // pred_check
      _
    $region19: #{fast_rcnn_predictor.1} parent=1 // pred_check_branch
      %71 = sbr.rel (0) target = $region21
    $region20: #{fast_rcnn_predictor.1} parent=1 // pred_region
      _
    $region21: #{fast_rcnn_predictor.1} parent=1 // pred_fallthru
      _
    // Predicated region
    $region22: #{fast_rcnn_predictor.1} parent=1 // pred_check
      _
    $region23: #{fast_rcnn_predictor.1} parent=1 // pred_check_branch
      %73 = sbr.rel (0) target = $region25
    $region24: #{fast_rcnn_predictor.1} parent=1 // pred_region
      _
    $region25: #{fast_rcnn_predictor.1} parent=1 // pred_fallthru
      _
    %74 = vsyncpa [#allocation3], 1

</llo_original>
